<compile_context>
chip_gen: v7x
topology: tpu7x:2x2x1
jax: 0.10.0
libtpu: 0.0.40
codegen_flags: <defaults>
</compile_context>

<pallas_src>
import math

import jax
import jax.numpy as jnp
from jax.experimental import pallas as pl
from jax.experimental.pallas import tpu as pltpu


_VMEM_LIMIT_BYTES = 32 * 1024 * 1024    # requested scoped VMEM (safe on v5e/v6e/v7x)
_VMEM_BUDGET_BYTES = 20 * 1024 * 1024   # pipelined working-set target (headroom)
_TARGET_BLOCK_BYTES = 2 * 1024 * 1024   # ~1-4 MiB per x tile hits ~85% HBM roofline


def _build_pos_enc(d_model: int, max_tokens: int) -> jnp.ndarray:
    """Sin/cos table exactly matching the PyTorch __init__ math (fp32)."""
    pos = jnp.arange(max_tokens, dtype=jnp.float32)[:, None]          # (T, 1)
    idx = jnp.arange(d_model, dtype=jnp.float32)[None, :]             # (1, D)
    denom = jnp.power(10000.0, 2.0 * idx / float(d_model))            # (1, D)
    x = pos / denom                                                   # (T, D)
    pe = jnp.zeros((max_tokens, d_model), dtype=jnp.float32)
    pe = pe.at[:, 0::2].set(jnp.sin(x[:, 0::2]))
    pe = pe.at[:, 1::2].set(jnp.cos(x[:, 1::2]))
    return pe


def _add_pe_kernel(x_ref, pe_ref, o_ref):
    # x_ref/o_ref: (TB, TS, Df); pe_ref: (TS, Df) fp32.
    # Single hoisted broadcast of pe across the batch tile; add in f32
    # (matches PyTorch type promotion), one cast to the output dtype.
    x = x_ref[...].astype(jnp.float32)
    pe = pe_ref[...].astype(jnp.float32)[None, :, :]
    o_ref[...] = (x + pe).astype(o_ref.dtype)


def _choose_tiles(B, Sf, Df, x_itemsize, out_itemsize):
    """VMEM-byte-aware (TB, TS) selection.

    Double-buffered working set: 2*TB*TS*Df*(x+out itemsize) + 2*TS*Df*4 (pe).
    Keep it under _VMEM_BUDGET_BYTES; grow TB when the per-step block would
    otherwise be tiny (small S / small Df) so DMAs stay in the 1-4 MiB range.
    """
    xo_row = Df * (x_itemsize + out_itemsize)      # x + out bytes per seq row
    pe_row = Df * 4                                # pe bytes per seq row (fp32)

    ts_cap = max(1, _VMEM_BUDGET_BYTES // (2 * (xo_row + pe_row)))
    ts = min(Sf, 512, ts_cap)                      # >512 rows: <1% extra roofline
    if Sf >= 8:
        ts = max(8, (ts // 8) * 8)                 # sublane granularity
    else:
        ts = Sf                                    # full extent (allowed < 8)

    tb = 1
    x_block = ts * Df * x_itemsize
    if B > 1 and x_block < _TARGET_BLOCK_BYTES:
        tb = min(B, max(1, _TARGET_BLOCK_BYTES // x_block))
        tb_cap = max(1, (_VMEM_BUDGET_BYTES - 2 * ts * pe_row) // (2 * ts * xo_row))
        tb = min(tb, tb_cap)
    return tb, ts


def sine_cosine_positional_encoding(x: jnp.ndarray, pos_enc: jnp.ndarray) -> jnp.ndarray:
    """x: (B, S, D); pos_enc: (max_tokens, D) fp32. Returns x + pos_enc[:S]."""
    B, S, D = x.shape
    max_tokens = pos_enc.shape[0]
    assert pos_enc.shape[1] == D and S <= max_tokens
    out_dtype = jnp.result_type(x.dtype, pos_enc.dtype)   # PyTorch promotion

    # Lane densification: fold k sequence rows into lanes so the last dim is
    # a multiple of 128.  Pad S up to a multiple of k if needed (costs at most
    # k-1 extra rows of HBM traffic, avoids masked partial stores).
    k = 1
    if D % 128 != 0:
        k = 128 // math.gcd(D, 128)                # = lcm(D, 128) / D
    S_pad = -(-S // k) * k
    Sf, Df = S_pad // k, D * k

    if S_pad != S:
        x = jnp.pad(x, ((0, 0), (0, S_pad - S), (0, 0)))
    xf = x.reshape(B, Sf, Df)

    TB, TS = _choose_tiles(B, Sf, Df, x.dtype.itemsize, out_dtype.itemsize)

    # pe stays fp32; prefer passing the WHOLE folded table (row-major reshape,
    # no copy, no per-call slice/cast pass) and letting the BlockSpec pick
    # rows.  Fall back to an explicit slice+pad only when the folded table or
    # the tile size is incompatible with the (8,128) block constraints.
    use_full_table = (max_tokens % k == 0) and (TS % 8 == 0)
    if use_full_table:
        pef = pos_enc.reshape(max_tokens // k, Df)
    else:
        rows = min(S_pad, max_tokens)
        pe_rows = pos_enc[:rows]
        if rows < S_pad:
            pe_rows = jnp.pad(pe_rows, ((0, S_pad - rows), (0, 0)))
        pef = pe_rows.reshape(Sf, Df)

    num_s = pl.cdiv(Sf, TS)
    num_b = pl.cdiv(B, TB)

    out = pl.pallas_call(
        _add_pe_kernel,
        out_shape=jax.ShapeDtypeStruct((B, Sf, Df), out_dtype),
        grid_spec=pltpu.PrefetchScalarGridSpec(
            num_scalar_prefetch=0,
            # seq-tile index OUTER, batch-tile INNER: the pe tile's block
            # index is constant across the inner loop, so it is DMA'd only
            # num_s times in total.
            grid=(num_s, num_b),
            in_specs=[
                pl.BlockSpec((TB, TS, Df), lambda s, b: (b, s, 0)),   # x
                pl.BlockSpec((TS, Df), lambda s, b: (s, 0)),          # pe
            ],
            out_specs=pl.BlockSpec((TB, TS, Df), lambda s, b: (b, s, 0)),
        ),
        compiler_params=pltpu.CompilerParams(
            dimension_semantics=("parallel", "parallel"),
            vmem_limit_bytes=_VMEM_LIMIT_BYTES,
        ),
        # TODO(synk): add input_output_aliases={0: 0} if x is dead after this
        # op in the surrounding model (halves peak HBM footprint).
    )(xf, pef)

    out = out.reshape(B, S_pad, D)
    if S_pad != S:
        out = out[:, :S, :]
    return out


if __name__ == "__main__":
    key = jax.random.PRNGKey(0)
    k1, k2, k3 = jax.random.split(key, 3)

    # Check 1: small d_model (lane folding, k=4, full-fold path). D=32 -> Df=128.
    B, S, D, T = 2, 8, 32, 64
    x1 = jax.random.normal(k1, (B, S, D), dtype=jnp.float32)
    pe1 = _build_pos_enc(D, T)
    out1 = jax.block_until_ready(sine_cosine_positional_encoding(x1, pe1))
    ref1 = x1 + pe1[:S, :][None, :, :]
    assert out1.shape == (B, S, D) and out1.dtype == jnp.float32
    assert jnp.allclose(out1, ref1, atol=1e-6), "mismatch vs reference (D=32)"

    # Check 2: module-default d_model=512 (already lane-dense, full-table path,
    # batch tiled into a single block).
    D2, S2, T2 = 512, 8, 16
    x2 = jax.random.normal(k2, (B, S2, D2), dtype=jnp.float32)
    pe2 = _build_pos_enc(D2, T2)
    out2 = jax.block_until_ready(sine_cosine_positional_encoding(x2, pe2))
    ref2 = x2 + pe2[:S2, :][None, :, :]
    assert jnp.allclose(out2, ref2, atol=1e-6), "mismatch vs reference (D=512)"

    # Check 3: D=24 (k=16) with S=10 not a multiple of k -> sequence padding
    # fallback instead of masked partial stores.
    D3, S3, T3 = 24, 10, 32
    x3 = jax.random.normal(k3, (B, S3, D3), dtype=jnp.float32)
    pe3 = _build_pos_enc(D3, T3)
    out3 = jax.block_until_ready(sine_cosine_positional_encoding(x3, pe3))
    ref3 = x3 + pe3[:S3, :][None, :, :]
    assert out3.shape == (B, S3, D3)
    assert jnp.allclose(out3, ref3, atol=1e-6), "mismatch vs reference (D=24, padded S)"

    print("KERNEL_OK")
</pallas_src>

<mosaic_0001>
module attributes {stable_mosaic.version = 11 : i64} {
  func.func @_add_pe_kernel(%arg0: i32, %arg1: i32, %arg2: memref<2x2x128xf32, #tpu.memory_space<vmem>>, %arg3: memref<2x128xf32, #tpu.memory_space<vmem>>, %arg4: memref<2x2x128xf32, #tpu.memory_space<vmem>>) attributes {dimension_semantics = [#tpu.dimension_semantics<parallel>, #tpu.dimension_semantics<parallel>], iteration_bounds = array<i64: 1, 1>, scalar_prefetch = 0 : i64, scratch_operands = 0 : i64, tpu.core_type = #tpu.core_type<tc>, window_params = [{transform_indices = @transform_0, window_bounds = array<i64: 2, 2, 128>}, {transform_indices = @transform_1, window_bounds = array<i64: 2, 128>}, {transform_indices = @transform_2, window_bounds = array<i64: 2, 2, 128>}]} {
    %c0 = arith.constant 0 : index
    %c0_0 = arith.constant 0 : index
    %c0_1 = arith.constant 0 : index
    %0 = vector.load %arg2[%c0, %c0_0, %c0_1] : memref<2x2x128xf32, #tpu.memory_space<vmem>>, vector<2x2x128xf32>
    %c0_2 = arith.constant 0 : index
    %c0_3 = arith.constant 0 : index
    %1 = vector.load %arg3[%c0_2, %c0_3] : memref<2x128xf32, #tpu.memory_space<vmem>>, vector<2x128xf32>
    %2 = vector.shape_cast %1 : vector<2x128xf32> to vector<1x2x128xf32>
    %3 = vector.broadcast %2 : vector<1x2x128xf32> to vector<2x2x128xf32>
    %4 = arith.addf %0, %3 : vector<2x2x128xf32>
    %c0_4 = arith.constant 0 : index
    %c0_5 = arith.constant 0 : index
    %c0_6 = arith.constant 0 : index
    %5 = vector.load %arg4[%c0_4, %c0_5, %c0_6] : memref<2x2x128xf32, #tpu.memory_space<vmem>>, vector<2x2x128xf32>
    tpu.vector_store %arg4[%c0_4, %c0_5, %c0_6], %4 {strides = array<i32>} : memref<2x2x128xf32, #tpu.memory_space<vmem>>, vector<2x2x128xf32>,
    return
  }
  func.func @transform_0(%arg0: i32, %arg1: i32) -> (i32, i32, i32) {
    %c0_i32 = arith.constant 0 : i32
    %c0_i32_0 = arith.constant 0 : i32
    return %arg1, %arg0, %c0_i32 : i32, i32, i32
  }
  func.func @transform_1(%arg0: i32, %arg1: i32) -> (i32, i32) {
    %c0_i32 = arith.constant 0 : i32
    %c0_i32_0 = arith.constant 0 : i32
    return %arg0, %c0_i32 : i32, i32
  }
  func.func @transform_2(%arg0: i32, %arg1: i32) -> (i32, i32, i32) {
    %c0_i32 = arith.constant 0 : i32
    %c0_i32_0 = arith.constant 0 : i32
    return %arg1, %arg0, %c0_i32 : i32, i32, i32
  }
}

</mosaic_0001>

<llo_original>
// kernel: tpu_custom_call.1
$region0: #{tpu_custom_call.1}
  #allocation0 [shape = 'u32[]', space=smem, size = 0x4, offset = 0x4, fixed_abs, tag = 'smem constant byte address 0x4 - core index']
  #allocation1 [shape = 'u32[144,128]{1,0:T(1,128)}', space=vmem, size = 0x12000, scoped, tag = 'internal scratch']
  %s0 = inlined_call_operand.hbm [shape: f32[2,2,128], index: 0, kind: input, shape index: {}]
  %s1 = inlined_call_operand.vmem [shape: f32[2,128], index: 1, kind: input, shape index: {}]
  %s2 = inlined_call_operand.hbm [shape: f32[2,2,128], index: 2, kind: output, shape index: {}]
  %s3 = sld [smem:[#allocation0]]
  $region22: #{tpu_custom_call.1} parent=0
    _
  %s5 = ssub.s32 1, %s3
  %s6 = scalar_select 0, %s5, %s3
  $region1: #{tpu_custom_call.1} parent=0
    #allocation2 [shape = 'u8[2048]{0}', space=vmem, size = 0x800, scoped, tag = 'input window, operand 0, single buffered']
    #allocation3 [shape = 's32[1]{0}', space=sflag, size = 0x4, scoped, tag = 'scoped memory for tpu_custom_call.1']
    #allocation4 [shape = 's32[1]{0}', space=sflag, size = 0x4, scoped, tag = 'scoped memory for tpu_custom_call.1']
    #allocation5 [shape = 'u8[2048]{0}', space=vmem, size = 0x800, scoped, tag = 'output window, operand 0, single buffered']
    %7 = vsyncpa [#allocation3], 0
    %8 = vsyncpa [#allocation4], 0
    // Predicated region
    $region2: #{tpu_custom_call.1} parent=1 // pred_check
      _
    $region3: #{tpu_custom_call.1} parent=1 // pred_check_branch
      %10 = sbr.rel (0) target = $region5
    $region4: #{tpu_custom_call.1} parent=1 // pred_region
      %s12 = ssub.s32 64, 64
      %13 = vsyncadd [#allocation3], %s12
      %s14 = sshll.u32 [#allocation2], 4
      %s15 = int_to_ptr.vmem [resolvable:$true] %s14
      %20 = dma.hbm_to_vmem [thread:$0]  %s0, 64, %s15, [#allocation3], 32, 32, 2
    $region5: #{tpu_custom_call.1} parent=1 // pred_fallthru
      _
    // Predicated region
    $region6: #{tpu_custom_call.1} parent=1 // pred_check
      _
    $region7: #{tpu_custom_call.1} parent=1 // pred_check_branch
      %22 = sbr.rel (0) target = $region9
    $region8: #{tpu_custom_call.1} parent=1 // pred_region
      _
    $region9: #{tpu_custom_call.1} parent=1 // pred_fallthru
      _
    // Predicated region
    $region10: #{tpu_custom_call.1} parent=1 // pred_check
      _
    $region11: #{tpu_custom_call.1} parent=1 // pred_check_branch
      %24 = sbr.rel (0) target = $region13
    $region12: #{tpu_custom_call.1} parent=1 // pred_region
      %25 = dma.done [#allocation3], 64
    $region13: #{tpu_custom_call.1} parent=1 // pred_fallthru
      _
    %v26 = vld [vmem:[#allocation2] sm:$0x3]
    %v27 = vld [vmem:[#allocation2 + $0x2] sm:$0x3]
    %v28 = vld [vmem:[%s1] sm:$0x3]
    %v29 = vadd.f32 %v26, %v28
    %v30 = vadd.f32 %v27, %v28
    %31 = vst [vmem:[#allocation5] sm:$0x3] %v29
    %32 = vst [vmem:[#allocation5 + $0x2] sm:$0x3] %v30
    // Predicated region
    $region14: #{tpu_custom_call.1} parent=1 // pred_check
      _
    $region15: #{tpu_custom_call.1} parent=1 // pred_check_branch
      %34 = sbr.rel (0) target = $region17
    $region16: #{tpu_custom_call.1} parent=1 // pred_region
      %s36 = ssub.s32 64, 64
      %37 = vsyncadd [#allocation4], %s36
      %s38 = sshll.u32 [#allocation5], 4
      %s39 = int_to_ptr.vmem [resolvable:$true] %s38
      %44 = dma.vmem_to_hbm [thread:$0]  %s39, 64, %s2, [#allocation4], 32, 32, 2
    $region17: #{tpu_custom_call.1} parent=1 // pred_fallthru
      _
    // Predicated region
    $region18: #{tpu_custom_call.1} parent=1 // pred_check
      _
    $region19: #{tpu_custom_call.1} parent=1 // pred_check_branch
      %46 = sbr.rel (0) target = $region21
    $region20: #{tpu_custom_call.1} parent=1 // pred_region
      %47 = dma.done [#allocation4], 64
    $region21: #{tpu_custom_call.1} parent=1 // pred_fallthru
      _
    %48 = vsyncpa [#allocation3], 1
    %49 = vsyncpa [#allocation4], 1

</llo_original>
